<compile_context>
chip_gen: v7x
topology: tpu7x:2x2x1
jax: 0.10.0
libtpu: 0.0.40
codegen_flags: <defaults>
</compile_context>

<pallas_src>
import functools

import jax
import jax.numpy as jnp
from jax import lax
from jax.experimental import pallas as pl
from jax.experimental.pallas import tpu as pltpu


def _round_up(x, m):
    return ((x + m - 1) // m) * m


def _lstm_recurrence_kernel(g_ref, w_hbm_ref, out_ref, h_scr, c_scr, w_scr, w_sem,
                            *, hidden, time_chunk, unroll):
    """Run `time_chunk` LSTM steps for one grid invocation.

    g_ref    : (T, Bp, 4*Hp)  precomputed gate pre-activations (x @ W_ih^T + b), compute dtype
    w_hbm_ref: (Hp, 4*Hp)     recurrent weight W_hh^T in HBM (pl.ANY); copied once to w_scr
    out_ref  : (T, Bp, Hp)    per-step hidden state output (compute dtype)
    h_scr    : (Bp, Hp)       compute-dtype hidden state, carried across grid steps
    c_scr    : (Bp, Hp)       f32 cell state, carried across grid steps
    w_scr    : (Hp, 4*Hp)     single-buffered VMEM-resident copy of W_hh^T
    """
    Hp = hidden

    @pl.when(pl.program_id(0) == 0)
    def _():
        h_scr[...] = jnp.zeros_like(h_scr)
        c_scr[...] = jnp.zeros_like(c_scr)
        cp = pltpu.make_async_copy(w_hbm_ref, w_scr, w_sem)
        cp.start()
        cp.wait()

    w_hh = w_scr[...]  # resident; loaded once per chunk

    def step(tt, carry):
        h_prev = h_scr[...]   # compute dtype (feeds MXU directly, no per-step cast)
        c_prev = c_scr[...]   # f32

        # Only the recurrent (Bp, Hp) x (Hp, 4Hp) matmul lives inside the serial loop;
        # the x @ W_ih^T projection was hoisted into g_ref.  f32 accumulation on the MXU.
        gates = g_ref[tt].astype(jnp.float32) + jnp.dot(
            h_prev, w_hh, preferred_element_type=jnp.float32
        )

        # Gate layout [i | f | g | o]; each slab is a lane-aligned Hp (=k*128) slice.
        # Elementwise/activation math stays f32 (v5e VPU/EUP have no bf16).
        i_g = jax.nn.sigmoid(gates[:, 0 * Hp:1 * Hp])
        f_g = jax.nn.sigmoid(gates[:, 1 * Hp:2 * Hp])
        g_g = jnp.tanh(gates[:, 2 * Hp:3 * Hp])
        o_g = jax.nn.sigmoid(gates[:, 3 * Hp:4 * Hp])

        c_new = f_g * c_prev + i_g * g_g
        h_new = (o_g * jnp.tanh(c_new)).astype(h_scr.dtype)  # single cast, reused twice

        c_scr[...] = c_new
        h_scr[...] = h_new
        out_ref[tt] = h_new.astype(out_ref.dtype)  # no-op cast (out dtype == compute dtype)
        return carry

    lax.fori_loop(0, time_chunk, step, 0, unroll=unroll)


def lstm_forward(x, w_ih, w_hh, b_ih, b_hh, *, time_chunk=32, compute_dtype=jnp.bfloat16):
    """x: (B, S, I). Returns (B, S, H) — equivalent to nn.LSTM(batch_first=True)(x)[0]."""
    B, S, I = x.shape
    H = w_hh.shape[1]
    assert w_ih.shape == (4 * H, I)

    # Tiling / padding: lane dim multiple of 128, sublane multiple of 8.
    Hp = _round_up(H, 128)
    Bp = _round_up(B, 8)
    cbytes = jnp.dtype(compute_dtype).itemsize

    # Per-generation VMEM cap with headroom below physical (~48 MiB on v7x, ~112 on v5e/v6e),
    # and derive the time chunk T from it instead of clamping the limit independently.
    try:
        vmem_cap = int(pltpu.get_tpu_info().vmem_capacity_bytes)
    except Exception:
        vmem_cap = 64 << 20
    cap = max(32 << 20, vmem_cap - (16 << 20))

    fixed = (Hp * 4 * Hp * cbytes        # W_hh^T, single-buffered VMEM scratch
             + Bp * Hp * cbytes          # h state
             + Bp * Hp * 4               # c state (f32)
             + (2 << 20))                # compiler/internal scratch headroom
    per_t = (2 * Bp * 4 * Hp * cbytes    # double-buffered gate pre-activation rows
             + 2 * Bp * Hp * cbytes)     # double-buffered output rows
    t_fit = max(1, int((cap - fixed) // per_t))
    T = int(max(1, min(time_chunk, S, t_fit)))
    Sp = _round_up(S, T)
    n_chunks = Sp // T
    vmem_limit = int(min(max(fixed + T * per_t + (4 << 20), 32 << 20), cap))

    # Repack the 4H gate axis so each gate occupies its own lane-aligned Hp slab
    # (zero padding => padded hidden lanes stay exactly 0 through the recurrence).
    def regate(m, axis):
        parts = jnp.split(m, 4, axis=axis)
        pad = [(0, 0)] * m.ndim
        pad[axis] = (0, Hp - H)
        return jnp.concatenate([jnp.pad(p, pad) for p in parts], axis=axis)

    w_ih_p = regate(w_ih, 0).astype(compute_dtype)                        # (4Hp, I)
    w_hh_t = jnp.transpose(
        jnp.pad(regate(w_hh, 0), ((0, 0), (0, Hp - H))), (1, 0)
    ).astype(compute_dtype)                                               # (Hp, 4Hp)
    b_p = regate((b_ih + b_hh).reshape(1, 4 * H), 1)                      # (1, 4Hp) f32

    # Hoisted (fully parallel) input projection in the compute dtype.  Pad x first so the
    # einsum writes a single (Sp, Bp, 4Hp) compute-dtype buffer; HIGHEST precision is only
    # used when the compute dtype is f32 (otherwise the bf16 truncation dominates anyway).
    x_p = jnp.pad(x, ((0, Bp - B), (0, Sp - S), (0, 0))).astype(compute_dtype)  # (Bp, Sp, I)
    prec = (lax.Precision.HIGHEST
            if jnp.dtype(compute_dtype) == jnp.dtype(jnp.float32)
            else lax.Precision.DEFAULT)
    g_pre = (
        jnp.einsum("bsi,gi->sbg", x_p, w_ih_p,
                   preferred_element_type=jnp.float32, precision=prec)
        + b_p
    ).astype(compute_dtype)                                               # (Sp, Bp, 4Hp)

    kernel = functools.partial(
        _lstm_recurrence_kernel, hidden=Hp, time_chunk=T, unroll=min(8, T))

    out_tm = pl.pallas_call(
        kernel,
        out_shape=jax.ShapeDtypeStruct((Sp, Bp, Hp), compute_dtype),
        grid_spec=pltpu.PrefetchScalarGridSpec(
            num_scalar_prefetch=0,
            grid=(n_chunks,),
            in_specs=[
                pl.BlockSpec((T, Bp, 4 * Hp), lambda c: (c, 0, 0)),  # gate pre-act chunk
                pl.BlockSpec(memory_space=pl.ANY),                   # W_hh^T stays in HBM
            ],
            out_specs=pl.BlockSpec((T, Bp, Hp), lambda c: (c, 0, 0)),
            scratch_shapes=[
                pltpu.VMEM((Bp, Hp), compute_dtype),      # h state (carried across chunks)
                pltpu.VMEM((Bp, Hp), jnp.float32),        # c state (carried across chunks)
                pltpu.VMEM((Hp, 4 * Hp), compute_dtype),  # W_hh^T, single-buffered resident
                pltpu.SemaphoreType.DMA(()),              # semaphore for the one-time DMA
            ],
        ),
        compiler_params=pltpu.CompilerParams(
            dimension_semantics=("arbitrary",),  # time recurrence is inherently serial
            vmem_limit_bytes=vmem_limit,
        ),
    )(g_pre, w_hh_t)

    # Time-major (Sp, Bp, Hp) compute-dtype -> batch_first (B, S, H) in the input dtype.
    return jnp.transpose(out_tm[:S, :B, :H], (1, 0, 2)).astype(x.dtype)


def lstm_reference(x, w_ih, w_hh, b_ih, b_hh):
    """Pure-JAX reference matching nn.LSTM forward semantics (f32)."""
    B, S, I = x.shape
    H = w_hh.shape[1]
    b = b_ih + b_hh
    hi = lax.Precision.HIGHEST

    def step(carry, x_t):
        h, c = carry
        gates = (
            jnp.dot(x_t, w_ih.T, precision=hi)
            + jnp.dot(h, w_hh.T, precision=hi)
            + b
        )
        i = jax.nn.sigmoid(gates[:, 0 * H:1 * H])
        f = jax.nn.sigmoid(gates[:, 1 * H:2 * H])
        g = jnp.tanh(gates[:, 2 * H:3 * H])
        o = jax.nn.sigmoid(gates[:, 3 * H:4 * H])
        c = f * c + i * g
        h = o * jnp.tanh(c)
        return (h, c), h

    h0 = jnp.zeros((B, H), jnp.float32)
    c0 = jnp.zeros((B, H), jnp.float32)
    _, hs = lax.scan(step, (h0, c0), jnp.transpose(x, (1, 0, 2)))
    return jnp.transpose(hs, (1, 0, 2))


if __name__ == "__main__":
    B, S, I, H = 2, 8, 16, 32

    key = jax.random.PRNGKey(0)
    kx, k1, k2, k3, k4 = jax.random.split(key, 5)

    scale = 1.0 / jnp.sqrt(H)
    x = jax.random.normal(kx, (B, S, I), jnp.float32)
    w_ih = jax.random.uniform(k1, (4 * H, I), jnp.float32, -scale, scale)
    w_hh = jax.random.uniform(k2, (4 * H, H), jnp.float32, -scale, scale)
    b_ih = jax.random.uniform(k3, (4 * H,), jnp.float32, -scale, scale)
    b_hh = jax.random.uniform(k4, (4 * H,), jnp.float32, -scale, scale)

    ref = lstm_reference(x, w_ih, w_hh, b_ih, b_hh)

    # f32 MXU-operand path, time_chunk=4 (exercises h/c carry across multiple grid chunks).
    out_f32 = jax.block_until_ready(
        lstm_forward(x, w_ih, w_hh, b_ih, b_hh, time_chunk=4, compute_dtype=jnp.float32)
    )
    assert out_f32.shape == (B, S, H)
    assert jnp.allclose(out_f32, ref, atol=1e-4, rtol=1e-4), "f32 mismatch vs reference"

    # bf16 MXU-operand / stream / output path (f32 accumulation, f32 gate math & c state).
    out_bf16 = jax.block_until_ready(
        lstm_forward(x, w_ih, w_hh, b_ih, b_hh, time_chunk=32, compute_dtype=jnp.bfloat16)
    )
    assert out_bf16.shape == (B, S, H)
    assert jnp.allclose(out_bf16, ref, atol=5e-2, rtol=5e-2), "bf16 mismatch vs reference"

    print("KERNEL_OK")
</pallas_src>

<mosaic_0001>
module attributes {stable_mosaic.version = 11 : i64} {
  func.func @_lstm_recurrence_kernel(%arg0: i32, %arg1: memref<4x8x512xf32, #tpu.memory_space<vmem>>, %arg2: memref<128x512xf32, #tpu.memory_space<any>>, %arg3: memref<4x8x128xf32, #tpu.memory_space<vmem>>, %arg4: memref<8x128xf32, #tpu.memory_space<vmem>>, %arg5: memref<8x128xf32, #tpu.memory_space<vmem>>, %arg6: memref<128x512xf32, #tpu.memory_space<vmem>>, %arg7: memref<!tpu.dma_semaphore, #tpu.memory_space<semaphore_mem>>) attributes {dimension_semantics = [#tpu.dimension_semantics<arbitrary>], iteration_bounds = array<i64: 2>, scalar_prefetch = 0 : i64, scratch_operands = 4 : i64, tpu.core_type = #tpu.core_type<tc>, window_params = [{transform_indices = @transform_0, window_bounds = array<i64: 4, 8, 512>}, {}, {transform_indices = @transform_2, window_bounds = array<i64: 4, 8, 128>}]} {
    %c0_i32 = arith.constant 0 : i32
    %0 = arith.cmpi eq, %arg0, %c0_i32 : i32
    %1 = arith.extui %0 : i1 to i32
    %c0_i32_0 = arith.constant 0 : i32
    %2 = arith.cmpi ne, %1, %c0_i32_0 : i32
    scf.if %2 {
      %cst_66 = arith.constant 0.000000e+00 : f32
      %156 = vector.broadcast %cst_66 : f32 to vector<8x128xf32>
      %c0_67 = arith.constant 0 : index
      %c0_68 = arith.constant 0 : index
      %157 = vector.load %arg4[%c0_67, %c0_68] : memref<8x128xf32, #tpu.memory_space<vmem>>, vector<8x128xf32>
      tpu.vector_store %arg4[%c0_67, %c0_68], %156 {strides = array<i32>} : memref<8x128xf32, #tpu.memory_space<vmem>>, vector<8x128xf32>,
      %cst_69 = arith.constant 0.000000e+00 : f32
      %158 = vector.broadcast %cst_69 : f32 to vector<8x128xf32>
      %c0_70 = arith.constant 0 : index
      %c0_71 = arith.constant 0 : index
      %159 = vector.load %arg5[%c0_70, %c0_71] : memref<8x128xf32, #tpu.memory_space<vmem>>, vector<8x128xf32>
      tpu.vector_store %arg5[%c0_70, %c0_71], %158 {strides = array<i32>} : memref<8x128xf32, #tpu.memory_space<vmem>>, vector<8x128xf32>,
      tpu.enqueue_dma source(%arg2 : memref<128x512xf32, #tpu.memory_space<any>>) target(%arg6 : memref<128x512xf32, #tpu.memory_space<vmem>>) target_semaphore(%arg7 : memref<!tpu.dma_semaphore, #tpu.memory_space<semaphore_mem>>)
      tpu.wait_dma2 semaphore(%arg7 : memref<!tpu.dma_semaphore, #tpu.memory_space<semaphore_mem>>) src(%arg2 : memref<128x512xf32, #tpu.memory_space<any>>) dst(%arg6 : memref<128x512xf32, #tpu.memory_space<vmem>>)
    } else {
    }
    %c0 = arith.constant 0 : index
    %c0_1 = arith.constant 0 : index
    %3 = vector.load %arg6[%c0, %c0_1] : memref<128x512xf32, #tpu.memory_space<vmem>>, vector<128x512xf32>
    %c0_i32_2 = arith.constant 0 : i32
    %c0_3 = arith.constant 0 : index
    %c0_4 = arith.constant 0 : index
    %4 = vector.load %arg4[%c0_3, %c0_4] : memref<8x128xf32, #tpu.memory_space<vmem>>, vector<8x128xf32>
    %c0_5 = arith.constant 0 : index
    %c0_6 = arith.constant 0 : index
    %5 = vector.load %arg5[%c0_5, %c0_6] : memref<8x128xf32, #tpu.memory_space<vmem>>, vector<8x128xf32>
    %6 = arith.index_cast %c0_i32_2 : i32 to index
    %c0_7 = arith.constant 0 : index
    %c0_8 = arith.constant 0 : index
    %7 = vector.load %arg1[%6, %c0_7, %c0_8] : memref<4x8x512xf32, #tpu.memory_space<vmem>>, vector<1x8x512xf32>
    %8 = vector.shape_cast %7 : vector<1x8x512xf32> to vector<8x512xf32>
    %cst = arith.constant dense<0.000000e+00> : vector<8x512xf32>
    %9 = tpu.matmul %4, %3, %cst {dimension_numbers = #tpu.dot_dimension_numbers<[1], [0], [0], [1], [0, 0, 1, 1], [], []>} : vector<8x128xf32>, vector<128x512xf32>, vector<8x512xf32> -> vector<8x512xf32>
    %10 = arith.addf %8, %9 : vector<8x512xf32>
    %11 = vector.extract_strided_slice %10 {offsets = [0, 0], sizes = [8, 128], strides = [1, 1]} : vector<8x512xf32> to vector<8x128xf32>
    %12 = arith.negf %11 : vector<8x128xf32>
    %13 = math.exp %12 : vector<8x128xf32>
    %cst_9 = arith.constant 1.000000e+00 : f32
    %14 = vector.broadcast %cst_9 : f32 to vector<8x128xf32>
    %15 = arith.addf %14, %13 : vector<8x128xf32>
    %16 = arith.divf %14, %15 : vector<8x128xf32>
    %17 = vector.extract_strided_slice %10 {offsets = [0, 128], sizes = [8, 128], strides = [1, 1]} : vector<8x512xf32> to vector<8x128xf32>
    %18 = arith.negf %17 : vector<8x128xf32>
    %19 = math.exp %18 : vector<8x128xf32>
    %cst_10 = arith.constant 1.000000e+00 : f32
    %20 = vector.broadcast %cst_10 : f32 to vector<8x128xf32>
    %21 = arith.addf %20, %19 : vector<8x128xf32>
    %22 = arith.divf %20, %21 : vector<8x128xf32>
    %23 = vector.extract_strided_slice %10 {offsets = [0, 256], sizes = [8, 128], strides = [1, 1]} : vector<8x512xf32> to vector<8x128xf32>
    %24 = math.tanh %23 : vector<8x128xf32>
    %25 = vector.extract_strided_slice %10 {offsets = [0, 384], sizes = [8, 128], strides = [1, 1]} : vector<8x512xf32> to vector<8x128xf32>
    %26 = arith.negf %25 : vector<8x128xf32>
    %27 = math.exp %26 : vector<8x128xf32>
    %cst_11 = arith.constant 1.000000e+00 : f32
    %28 = vector.broadcast %cst_11 : f32 to vector<8x128xf32>
    %29 = arith.addf %28, %27 : vector<8x128xf32>
    %30 = arith.divf %28, %29 : vector<8x128xf32>
    %31 = arith.mulf %22, %5 : vector<8x128xf32>
    %32 = arith.mulf %16, %24 : vector<8x128xf32>
    %33 = arith.addf %31, %32 : vector<8x128xf32>
    %34 = math.tanh %33 : vector<8x128xf32>
    %35 = arith.mulf %30, %34 : vector<8x128xf32>
    %c0_12 = arith.constant 0 : index
    %c0_13 = arith.constant 0 : index
    %36 = vector.load %arg5[%c0_12, %c0_13] : memref<8x128xf32, #tpu.memory_space<vmem>>, vector<8x128xf32>
    tpu.vector_store %arg5[%c0_12, %c0_13], %33 {strides = array<i32>} : memref<8x128xf32, #tpu.memory_space<vmem>>, vector<8x128xf32>,
    %c0_14 = arith.constant 0 : index
    %c0_15 = arith.constant 0 : index
    %37 = vector.load %arg4[%c0_14, %c0_15] : memref<8x128xf32, #tpu.memory_space<vmem>>, vector<8x128xf32>
    tpu.vector_store %arg4[%c0_14, %c0_15], %35 {strides = array<i32>} : memref<8x128xf32, #tpu.memory_space<vmem>>, vector<8x128xf32>,
    %38 = arith.index_cast %c0_i32_2 : i32 to index
    %c0_16 = arith.constant 0 : index
    %c0_17 = arith.constant 0 : index
    %39 = vector.load %arg3[%38, %c0_16, %c0_17] : memref<4x8x128xf32, #tpu.memory_space<vmem>>, vector<1x8x128xf32>
    %40 = vector.shape_cast %39 : vector<1x8x128xf32> to vector<8x128xf32>
    %41 = vector.shape_cast %35 : vector<8x128xf32> to vector<1x8x128xf32>
    tpu.vector_store %arg3[%38, %c0_16, %c0_17], %41 {strides = array<i32>} : memref<4x8x128xf32, #tpu.memory_space<vmem>>, vector<1x8x128xf32>,
    %c1_i32 = arith.constant 1 : i32
    %c0_18 = arith.constant 0 : index
    %c0_19 = arith.constant 0 : index
    %42 = vector.load %arg4[%c0_18, %c0_19] : memref<8x128xf32, #tpu.memory_space<vmem>>, vector<8x128xf32>
    %c0_20 = arith.constant 0 : index
    %c0_21 = arith.constant 0 : index
    %43 = vector.load %arg5[%c0_20, %c0_21] : memref<8x128xf32, #tpu.memory_space<vmem>>, vector<8x128xf32>
    %44 = arith.index_cast %c1_i32 : i32 to index
    %c0_22 = arith.constant 0 : index
    %c0_23 = arith.constant 0 : index
    %45 = vector.load %arg1[%44, %c0_22, %c0_23] : memref<4x8x512xf32, #tpu.memory_space<vmem>>, vector<1x8x512xf32>
    %46 = vector.shape_cast %45 : vector<1x8x512xf32> to vector<8x512xf32>
    %cst_24 = arith.constant dense<0.000000e+00> : vector<8x512xf32>
    %47 = tpu.matmul %42, %3, %cst_24 {dimension_numbers = #tpu.dot_dimension_numbers<[1], [0], [0], [1], [0, 0, 1, 1], [], []>} : vector<8x128xf32>, vector<128x512xf32>, vector<8x512xf32> -> vector<8x512xf32>
    %48 = arith.addf %46, %47 : vector<8x512xf32>
    %49 = vector.extract_strided_slice %48 {offsets = [0, 0], sizes = [8, 128], strides = [1, 1]} : vector<8x512xf32> to vector<8x128xf32>
    %50 = arith.negf %49 : vector<8x128xf32>
    %51 = math.exp %50 : vector<8x128xf32>
    %cst_25 = arith.constant 1.000000e+00 : f32
    %52 = vector.broadcast %cst_25 : f32 to vector<8x128xf32>
    %53 = arith.addf %52, %51 : vector<8x128xf32>
    %54 = arith.divf %52, %53 : vector<8x128xf32>
    %55 = vector.extract_strided_slice %48 {offsets = [0, 128], sizes = [8, 128], strides = [1, 1]} : vector<8x512xf32> to vector<8x128xf32>
    %56 = arith.negf %55 : vector<8x128xf32>
    %57 = math.exp %56 : vector<8x128xf32>
    %cst_26 = arith.constant 1.000000e+00 : f32
    %58 = vector.broadcast %cst_26 : f32 to vector<8x128xf32>
    %59 = arith.addf %58, %57 : vector<8x128xf32>
    %60 = arith.divf %58, %59 : vector<8x128xf32>
    %61 = vector.extract_strided_slice %48 {offsets = [0, 256], sizes = [8, 128], strides = [1, 1]} : vector<8x512xf32> to vector<8x128xf32>
    %62 = math.tanh %61 : vector<8x128xf32>
    %63 = vector.extract_strided_slice %48 {offsets = [0, 384], sizes = [8, 128], strides = [1, 1]} : vector<8x512xf32> to vector<8x128xf32>
    %64 = arith.negf %63 : vector<8x128xf32>
    %65 = math.exp %64 : vector<8x128xf32>
    %cst_27 = arith.constant 1.000000e+00 : f32
    %66 = vector.broadcast %cst_27 : f32 to vector<8x128xf32>
    %67 = arith.addf %66, %65 : vector<8x128xf32>
    %68 = arith.divf %66, %67 : vector<8x128xf32>
    %69 = arith.mulf %60, %43 : vector<8x128xf32>
    %70 = arith.mulf %54, %62 : vector<8x128xf32>
    %71 = arith.addf %69, %70 : vector<8x128xf32>
    %72 = math.tanh %71 : vector<8x128xf32>
    %73 = arith.mulf %68, %72 : vector<8x128xf32>
    %c0_28 = arith.constant 0 : index
    %c0_29 = arith.constant 0 : index
    %74 = vector.load %arg5[%c0_28, %c0_29] : memref<8x128xf32, #tpu.memory_space<vmem>>, vector<8x128xf32>
    tpu.vector_store %arg5[%c0_28, %c0_29], %71 {strides = array<i32>} : memref<8x128xf32, #tpu.memory_space<vmem>>, vector<8x128xf32>,
    %c0_30 = arith.constant 0 : index
    %c0_31 = arith.constant 0 : index
    %75 = vector.load %arg4[%c0_30, %c0_31] : memref<8x128xf32, #tpu.memory_space<vmem>>, vector<8x128xf32>
    tpu.vector_store %arg4[%c0_30, %c0_31], %73 {strides = array<i32>} : memref<8x128xf32, #tpu.memory_space<vmem>>, vector<8x128xf32>,
    %76 = arith.index_cast %c1_i32 : i32 to index
    %c0_32 = arith.constant 0 : index
    %c0_33 = arith.constant 0 : index
    %77 = vector.load %arg3[%76, %c0_32, %c0_33] : memref<4x8x128xf32, #tpu.memory_space<vmem>>, vector<1x8x128xf32>
    %78 = vector.shape_cast %77 : vector<1x8x128xf32> to vector<8x128xf32>
    %79 = vector.shape_cast %73 : vector<8x128xf32> to vector<1x8x128xf32>
    tpu.vector_store %arg3[%76, %c0_32, %c0_33], %79 {strides = array<i32>} : memref<4x8x128xf32, #tpu.memory_space<vmem>>, vector<1x8x128xf32>,
    %c2_i32 = arith.constant 2 : i32
    %c0_34 = arith.constant 0 : index
    %c0_35 = arith.constant 0 : index
    %80 = vector.load %arg4[%c0_34, %c0_35] : memref<8x128xf32, #tpu.memory_space<vmem>>, vector<8x128xf32>
    %c0_36 = arith.constant 0 : index
    %c0_37 = arith.constant 0 : index
    %81 = vector.load %arg5[%c0_36, %c0_37] : memref<8x128xf32, #tpu.memory_space<vmem>>, vector<8x128xf32>
    %82 = arith.index_cast %c2_i32 : i32 to index
    %c0_38 = arith.constant 0 : index
    %c0_39 = arith.constant 0 : index
    %83 = vector.load %arg1[%82, %c0_38, %c0_39] : memref<4x8x512xf32, #tpu.memory_space<vmem>>, vector<1x8x512xf32>
    %84 = vector.shape_cast %83 : vector<1x8x512xf32> to vector<8x512xf32>
    %cst_40 = arith.constant dense<0.000000e+00> : vector<8x512xf32>
    %85 = tpu.matmul %80, %3, %cst_40 {dimension_numbers = #tpu.dot_dimension_numbers<[1], [0], [0], [1], [0, 0, 1, 1], [], []>} : vector<8x128xf32>, vector<128x512xf32>, vector<8x512xf32> -> vector<8x512xf32>
    %86 = arith.addf %84, %85 : vector<8x512xf32>
    %87 = vector.extract_strided_slice %86 {offsets = [0, 0], sizes = [8, 128], strides = [1, 1]} : vector<8x512xf32> to vector<8x128xf32>
    %88 = arith.negf %87 : vector<8x128xf32>
    %89 = math.exp %88 : vector<8x128xf32>
    %cst_41 = arith.constant 1.000000e+00 : f32
    %90 = vector.broadcast %cst_41 : f32 to vector<8x128xf32>
    %91 = arith.addf %90, %89 : vector<8x128xf32>
    %92 = arith.divf %90, %91 : vector<8x128xf32>
    %93 = vector.extract_strided_slice %86 {offsets = [0, 128], sizes = [8, 128], strides = [1, 1]} : vector<8x512xf32> to vector<8x128xf32>
    %94 = arith.negf %93 : vector<8x128xf32>
    %95 = math.exp %94 : vector<8x128xf32>
    %cst_42 = arith.constant 1.000000e+00 : f32
    %96 = vector.broadcast %cst_42 : f32 to vector<8x128xf32>
    %97 = arith.addf %96, %95 : vector<8x128xf32>
    %98 = arith.divf %96, %97 : vector<8x128xf32>
    %99 = vector.extract_strided_slice %86 {offsets = [0, 256], sizes = [8, 128], strides = [1, 1]} : vector<8x512xf32> to vector<8x128xf32>
    %100 = math.tanh %99 : vector<8x128xf32>
    %101 = vector.extract_strided_slice %86 {offsets = [0, 384], sizes = [8, 128], strides = [1, 1]} : vector<8x512xf32> to vector<8x128xf32>
    %102 = arith.negf %101 : vector<8x128xf32>
    %103 = math.exp %102 : vector<8x128xf32>
    %cst_43 = arith.constant 1.000000e+00 : f32
    %104 = vector.broadcast %cst_43 : f32 to vector<8x128xf32>
    %105 = arith.addf %104, %103 : vector<8x128xf32>
    %106 = arith.divf %104, %105 : vector<8x128xf32>
    %107 = arith.mulf %98, %81 : vector<8x128xf32>
    %108 = arith.mulf %92, %100 : vector<8x128xf32>
    %109 = arith.addf %107, %108 : vector<8x128xf32>
    %110 = math.tanh %109 : vector<8x128xf32>
    %111 = arith.mulf %106, %110 : vector<8x128xf32>
    %c0_44 = arith.constant 0 : index
    %c0_45 = arith.constant 0 : index
    %112 = vector.load %arg5[%c0_44, %c0_45] : memref<8x128xf32, #tpu.memory_space<vmem>>, vector<8x128xf32>
    tpu.vector_store %arg5[%c0_44, %c0_45], %109 {strides = array<i32>} : memref<8x128xf32, #tpu.memory_space<vmem>>, vector<8x128xf32>,
    %c0_46 = arith.constant 0 : index
    %c0_47 = arith.constant 0 : index
    %113 = vector.load %arg4[%c0_46, %c0_47] : memref<8x128xf32, #tpu.memory_space<vmem>>, vector<8x128xf32>
    tpu.vector_store %arg4[%c0_46, %c0_47], %111 {strides = array<i32>} : memref<8x128xf32, #tpu.memory_space<vmem>>, vector<8x128xf32>,
    %114 = arith.index_cast %c2_i32 : i32 to index
    %c0_48 = arith.constant 0 : index
    %c0_49 = arith.constant 0 : index
    %115 = vector.load %arg3[%114, %c0_48, %c0_49] : memref<4x8x128xf32, #tpu.memory_space<vmem>>, vector<1x8x128xf32>
    %116 = vector.shape_cast %115 : vector<1x8x128xf32> to vector<8x128xf32>
    %117 = vector.shape_cast %111 : vector<8x128xf32> to vector<1x8x128xf32>
    tpu.vector_store %arg3[%114, %c0_48, %c0_49], %117 {strides = array<i32>} : memref<4x8x128xf32, #tpu.memory_space<vmem>>, vector<1x8x128xf32>,
    %c3_i32 = arith.constant 3 : i32
    %c0_50 = arith.constant 0 : index
    %c0_51 = arith.constant 0 : index
    %118 = vector.load %arg4[%c0_50, %c0_51] : memref<8x128xf32, #tpu.memory_space<vmem>>, vector<8x128xf32>
    %c0_52 = arith.constant 0 : index
    %c0_53 = arith.constant 0 : index
    %119 = vector.load %arg5[%c0_52, %c0_53] : memref<8x128xf32, #tpu.memory_space<vmem>>, vector<8x128xf32>
    %120 = arith.index_cast %c3_i32 : i32 to index
    %c0_54 = arith.constant 0 : index
    %c0_55 = arith.constant 0 : index
    %121 = vector.load %arg1[%120, %c0_54, %c0_55] : memref<4x8x512xf32, #tpu.memory_space<vmem>>, vector<1x8x512xf32>
    %122 = vector.shape_cast %121 : vector<1x8x512xf32> to vector<8x512xf32>
    %cst_56 = arith.constant dense<0.000000e+00> : vector<8x512xf32>
    %123 = tpu.matmul %118, %3, %cst_56 {dimension_numbers = #tpu.dot_dimension_numbers<[1], [0], [0], [1], [0, 0, 1, 1], [], []>} : vector<8x128xf32>, vector<128x512xf32>, vector<8x512xf32> -> vector<8x512xf32>
    %124 = arith.addf %122, %123 : vector<8x512xf32>
    %125 = vector.extract_strided_slice %124 {offsets = [0, 0], sizes = [8, 128], strides = [1, 1]} : vector<8x512xf32> to vector<8x128xf32>
    %126 = arith.negf %125 : vector<8x128xf32>
    %127 = math.exp %126 : vector<8x128xf32>
    %cst_57 = arith.constant 1.000000e+00 : f32
    %128 = vector.broadcast %cst_57 : f32 to vector<8x128xf32>
    %129 = arith.addf %128, %127 : vector<8x128xf32>
    %130 = arith.divf %128, %129 : vector<8x128xf32>
    %131 = vector.extract_strided_slice %124 {offsets = [0, 128], sizes = [8, 128], strides = [1, 1]} : vector<8x512xf32> to vector<8x128xf32>
    %132 = arith.negf %131 : vector<8x128xf32>
    %133 = math.exp %132 : vector<8x128xf32>
    %cst_58 = arith.constant 1.000000e+00 : f32
    %134 = vector.broadcast %cst_58 : f32 to vector<8x128xf32>
    %135 = arith.addf %134, %133 : vector<8x128xf32>
    %136 = arith.divf %134, %135 : vector<8x128xf32>
    %137 = vector.extract_strided_slice %124 {offsets = [0, 256], sizes = [8, 128], strides = [1, 1]} : vector<8x512xf32> to vector<8x128xf32>
    %138 = math.tanh %137 : vector<8x128xf32>
    %139 = vector.extract_strided_slice %124 {offsets = [0, 384], sizes = [8, 128], strides = [1, 1]} : vector<8x512xf32> to vector<8x128xf32>
    %140 = arith.negf %139 : vector<8x128xf32>
    %141 = math.exp %140 : vector<8x128xf32>
    %cst_59 = arith.constant 1.000000e+00 : f32
    %142 = vector.broadcast %cst_59 : f32 to vector<8x128xf32>
    %143 = arith.addf %142, %141 : vector<8x128xf32>
    %144 = arith.divf %142, %143 : vector<8x128xf32>
    %145 = arith.mulf %136, %119 : vector<8x128xf32>
    %146 = arith.mulf %130, %138 : vector<8x128xf32>
    %147 = arith.addf %145, %146 : vector<8x128xf32>
    %148 = math.tanh %147 : vector<8x128xf32>
    %149 = arith.mulf %144, %148 : vector<8x128xf32>
    %c0_60 = arith.constant 0 : index
    %c0_61 = arith.constant 0 : index
    %150 = vector.load %arg5[%c0_60, %c0_61] : memref<8x128xf32, #tpu.memory_space<vmem>>, vector<8x128xf32>
    tpu.vector_store %arg5[%c0_60, %c0_61], %147 {strides = array<i32>} : memref<8x128xf32, #tpu.memory_space<vmem>>, vector<8x128xf32>,
    %c0_62 = arith.constant 0 : index
    %c0_63 = arith.constant 0 : index
    %151 = vector.load %arg4[%c0_62, %c0_63] : memref<8x128xf32, #tpu.memory_space<vmem>>, vector<8x128xf32>
    tpu.vector_store %arg4[%c0_62, %c0_63], %149 {strides = array<i32>} : memref<8x128xf32, #tpu.memory_space<vmem>>, vector<8x128xf32>,
    %152 = arith.index_cast %c3_i32 : i32 to index
    %c0_64 = arith.constant 0 : index
    %c0_65 = arith.constant 0 : index
    %153 = vector.load %arg3[%152, %c0_64, %c0_65] : memref<4x8x128xf32, #tpu.memory_space<vmem>>, vector<1x8x128xf32>
    %154 = vector.shape_cast %153 : vector<1x8x128xf32> to vector<8x128xf32>
    %155 = vector.shape_cast %149 : vector<8x128xf32> to vector<1x8x128xf32>
    tpu.vector_store %arg3[%152, %c0_64, %c0_65], %155 {strides = array<i32>} : memref<4x8x128xf32, #tpu.memory_space<vmem>>, vector<1x8x128xf32>,
    %c4_i32 = arith.constant 4 : i32
    return
  }
  func.func @transform_0(%arg0: i32) -> (i32, i32, i32) {
    %c0_i32 = arith.constant 0 : i32
    %c0_i32_0 = arith.constant 0 : i32
    %c0_i32_1 = arith.constant 0 : i32
    return %arg0, %c0_i32, %c0_i32_0 : i32, i32, i32
  }
  func.func @transform_2(%arg0: i32) -> (i32, i32, i32) {
    %c0_i32 = arith.constant 0 : i32
    %c0_i32_0 = arith.constant 0 : i32
    %c0_i32_1 = arith.constant 0 : i32
    return %arg0, %c0_i32, %c0_i32_0 : i32, i32, i32
  }
}

</mosaic_0001>

<llo_original>
// kernel: tpu_custom_call.1
$region0: #{tpu_custom_call.1}
  #allocation0 [shape = 'u32[]', space=smem, size = 0x4, offset = 0x4, fixed_abs, tag = 'smem constant byte address 0x4 - core index']
  #allocation1 [shape = 'u32[144,128]{1,0:T(1,128)}', space=vmem, size = 0x12000, scoped, tag = 'internal scratch']
  #allocation2 [shape = 'f32[8,128]{1,0:T(8,128)}', space=vmem, size = 0x1000, scoped, tag = 'scratch operand']
  #allocation3 [shape = 'f32[8,128]{1,0:T(8,128)}', space=vmem, size = 0x1000, scoped, tag = 'scratch operand']
  #allocation4 [shape = 'f32[128,512]{1,0:T(8,128)}', space=vmem, size = 0x40000, scoped, tag = 'scratch operand']
  #allocation5 [shape = 's32[1]{0}', space=sflag, size = 0x4, scoped, tag = 'scratch operand']
  #allocation10 [shape = 's32[]', space=sflag, size = 0x4, offset = 0, fixed_abs, tag = 'sflag constant byte address 0x0 - dummy sync flag']
  #allocation11 [shape = 's32[]', space=sflag, size = 0x4, offset = 0, fixed_abs, tag = 'sflag constant byte address 0x0 - dummy sync flag']
  #allocation12 [shape = 'u32[]', space=smem, size = 0x4, offset = 0x44, fixed_abs, tag = 'smem constant byte address 0x44 - assertion arg 0']
  #allocation13 [shape = 'u32[]', space=smem, size = 0x4, offset = 0x48, fixed_abs, tag = 'smem constant byte address 0x48 - assertion arg 1']
  %s0 = inlined_call_operand.hbm [shape: f32[8,8,512], index: 0, kind: input, shape index: {}]
  %s1 = inlined_call_operand.hbm [shape: f32[128,512], index: 1, kind: input, shape index: {}]
  %s2 = inlined_call_operand.hbm [shape: f32[8,8,128], index: 2, kind: output, shape index: {}]
  %s3 = sld [smem:[#allocation0]]
  $region49: #{tpu_custom_call.1} parent=0
    _
  %s5 = ssub.s32 1, %s3
  %s6 = scalar_select 0, %s5, %s3
  $region1: #{tpu_custom_call.1} parent=0
    #allocation6 [shape = 'u8[131072]{0}', space=vmem, size = 0x20000, scoped, tag = 'input window, operand 0']
    #allocation7 [shape = 's32[2]{0}', space=sflag, size = 0x8, scoped, tag = 'scoped memory for tpu_custom_call.1']
    #allocation8 [shape = 's32[2]{0}', space=sflag, size = 0x8, scoped, tag = 'scoped memory for tpu_custom_call.1']
    #allocation9 [shape = 'u8[32768]{0}', space=vmem, size = 0x8000, scoped, tag = 'output window, operand 0']
    %7 = vsyncpa [#allocation7], 0
    %s8 = scalar_lea.sflag [#allocation7], 1
    %9 = vsyncpa %s8, 0
    %10 = vsyncpa [#allocation8], 0
    %s11 = scalar_lea.sflag [#allocation8], 1
    %12 = vsyncpa %s11, 0
    loop: start=0, step=1, limit=4
    $region2: #{tpu_custom_call.1} parent=1 // loop_pre_header
      _
    $region3: #{tpu_custom_call.1} parent=1 // loop_header
      %s14 = sphi 0, %s18
      %p15 = scmp.ge.s32.totalorder %s14, 4
      %s24 = sphi 0, %s26
      %s27 = sphi 0, %s24
      %s28 = sphi 0, %s27
      %s44 = sphi 0, %s28
      %s50 = sphi 0, %s52
      %s53 = sphi 0, %s50
      %s54 = sphi 0, %s53
      %s70 = sphi 0, %s54
    $region4: #{tpu_custom_call.1} parent=1 // loop_header_branch
      %17 = sbr.rel (%p15) target = $region8
    $region5: #{tpu_custom_call.1} parent=1 // loop_body
      %s19 = ssub.s32 %s14, 1
      %s20 = ssub.s32 %s14, 2
      %s21 = sadd.s32 %s14, 1
      %s22 = ssub.s32 %s14, %s21
      %p23 = scmp.eq.s32.totalorder %s22, 0
      %s25 = sadd.s32 %s24, 1
      %s26 = scalar_select %p23, %s24, %s25
      %p29 = pneg %p23
      %p30 = scmp.eq.s32.totalorder %s14, 1
      %p31 = por %p29, %p30
      %p32 = scmp.ne.s32.totalorder %s24, %s27
      %p33 = scmp.eq.s32.totalorder %s14, 0
      %p34 = por %p32, %p33
      %p35 = scmp.ne.s32.totalorder %s24, %s27
      %p36 = scmp.eq.s32.totalorder %s19, 1
      %p37 = por %p35, %p36
      %p38 = scmp.ne.s32.totalorder %s27, %s28
      %p39 = scmp.eq.s32.totalorder %s19, 0
      %p40 = por %p38, %p39
      %p41 = scmp.ne.s32.totalorder %s27, %s28
      %p42 = scmp.eq.s32.totalorder %s20, 1
      %p43 = por %p41, %p42
      %p45 = scmp.ne.s32.totalorder %s28, %s44
      %p46 = scmp.eq.s32.totalorder %s20, 0
      %p47 = por %p45, %p46
      %s48 = ssub.s32 %s14, %s21
      %p49 = scmp.eq.s32.totalorder %s48, 0
      %s51 = sadd.s32 %s50, 1
      %s52 = scalar_select %p49, %s50, %s51
      %p55 = pneg %p49
      %p56 = scmp.eq.s32.totalorder %s14, 1
      %p57 = por %p55, %p56
      %p58 = scmp.ne.s32.totalorder %s50, %s53
      %p59 = scmp.eq.s32.totalorder %s14, 0
      %p60 = por %p58, %p59
      %p61 = scmp.ne.s32.totalorder %s50, %s53
      %p62 = scmp.eq.s32.totalorder %s19, 1
      %p63 = por %p61, %p62
      %p64 = scmp.ne.s32.totalorder %s53, %s54
      %p65 = scmp.eq.s32.totalorder %s19, 0
      %p66 = por %p64, %p65
      %p67 = scmp.ne.s32.totalorder %s53, %s54
      %p68 = scmp.eq.s32.totalorder %s20, 1
      %p69 = por %p67, %p68
      %p71 = scmp.ne.s32.totalorder %s54, %s70
      %p72 = scmp.eq.s32.totalorder %s20, 0
      %p73 = por %p71, %p72
      %p74 = scmp.le.s32.totalorder 1, %s14
      %p75 = scmp.lt.s32.totalorder %s14, 3
      %p76 = pnand %p74, %p75
      %p77 = pneg %p76
      // Predicated region
      $region9: #{tpu_custom_call.1} parent=5 // pred_check
        _
      $region10: #{tpu_custom_call.1} parent=5 // pred_check_branch
        %79 = sbr.rel (%p76) target = $region12
      $region11: #{tpu_custom_call.1} parent=5 // pred_region
        %s80 = ssub.s32 %s14, 1
      $region12: #{tpu_custom_call.1} parent=5 // pred_fallthru
        _
      %p81 = scmp.lt.s32.totalorder %s14, 2
      // Predicated region
      $region13: #{tpu_custom_call.1} parent=5 // pred_check
        %p82 = pneg %p81
      $region14: #{tpu_custom_call.1} parent=5 // pred_check_branch
        %84 = sbr.rel (%p82) target = $region16
      $region15: #{tpu_custom_call.1} parent=5 // pred_region
        // Predicated region
        $region17: #{tpu_custom_call.1} parent=15 // pred_check
          %p85 = pneg %p34
        $region18: #{tpu_custom_call.1} parent=15 // pred_check_branch
          %87 = sbr.rel (%p85) target = $region20
        $region19: #{tpu_custom_call.1} parent=15 // pred_region
          %s88 = sand.u32 %s24, 1
          %s89 = scalar_lea.sflag [#allocation7], %s88
          %s90 = sand.u32 %s24, 1
          %s91 = smul.addr %s90, 128
          %s92 = scalar_lea.vmem [#allocation6], %s91
          %s93 = smul.u32 4, %s14
          %s95 = ssub.s32 2048, 2048
          %96 = vsyncadd %s89, %s95
          %s97 = smul.addr %s93, 4
          %s98 = smul.addr %s97, 128
          %s99 = scalar_lea.hbm %s0, %s98
          %s100 = sshll.u32 %s92, 4
          %s101 = int_to_ptr.vmem [resolvable:$true] %s100
          %106 = dma.hbm_to_vmem [thread:$0]  %s99, 2048, %s101, %s89, 512, 512, 32
        $region20: #{tpu_custom_call.1} parent=15 // pred_fallthru
          _
      $region16: #{tpu_custom_call.1} parent=5 // pred_fallthru
        _
      %p107 = scmp.le.s32.totalorder 1, %s14
      %p108 = scmp.lt.s32.totalorder %s14, 3
      %p109 = pnand %p107, %p108
      %p110 = pneg %p109
      // Predicated region
      $region21: #{tpu_custom_call.1} parent=5 // pred_check
        _
      $region22: #{tpu_custom_call.1} parent=5 // pred_check_branch
        %112 = sbr.rel (%p109) target = $region24
      $region23: #{tpu_custom_call.1} parent=5 // pred_region
        %s113 = ssub.s32 %s14, 1
        %s114 = sand.u32 %s27, 1
        %s115 = scalar_lea.sflag [#allocation7], %s114
        %s116 = sand.u32 %s27, 1
        %s117 = smul.addr %s116, 128
        %s118 = scalar_lea.vmem [#allocation6], %s117
        // Predicated region
        $region25: #{tpu_custom_call.1} parent=23 // pred_check
          %p119 = pneg %p40
        $region26: #{tpu_custom_call.1} parent=23 // pred_check_branch
          %121 = sbr.rel (%p119) target = $region28
        $region27: #{tpu_custom_call.1} parent=23 // pred_region
          %122 = dma.done %s115, 2048
        $region28: #{tpu_custom_call.1} parent=23 // pred_fallthru
          _
        %s123 = sand.u32 %s27, 1
        %s124 = scalar_lea.sflag [#allocation7], %s123
        %s125 = sand.u32 %s27, 1
        %s126 = smul.addr %s125, 128
        %s127 = scalar_lea.vmem [#allocation6], %s126
        %p128 = pneg %p40
        %p129 = pneg %p37
        %p130 = pneg %p66
        %p131 = pneg %p63
        %s132 = sand.u32 %s53, 1
        %s133 = scalar_lea.sflag [#allocation8], %s132
        %s134 = sand.u32 %s53, 1
        %s135 = smul.addr %s134, 32
        %s136 = scalar_lea.vmem [#allocation9], %s135
        %s137 = smul.u32 4, %s19
        %s138 = smul.u32 4, %s19
        %p139 = scmp.eq.s32.totalorder %s19, 0
        // Predicated region
        $region29: #{tpu_custom_call.1} parent=23 // pred_check
          %p140 = pneg %p139
        $region30: #{tpu_custom_call.1} parent=23 // pred_check_branch
          %142 = sbr.rel (%p140) target = $region32
        $region31: #{tpu_custom_call.1} parent=23 // pred_region
          %143 = vst [vmem:[#allocation2] sm:$0xff] 0.0
          %144 = vst [vmem:[#allocation3] sm:$0xff] 0.0
          // Predicated region
          $region33: #{tpu_custom_call.1} parent=31 // pred_check
            _
          $region34: #{tpu_custom_call.1} parent=31 // pred_check_branch
            %146 = sbr.rel target = $region36
          $region35: #{tpu_custom_call.1} parent=31 // pred_region
            %147 = sst [smem:[#allocation12]] [#allocation11]
            %148 = sst [smem:[#allocation13]] [#allocation10]
          $region36: #{tpu_custom_call.1} parent=31 // pred_fallthru
            _
          %150 = shalt.err (0)
          %s152 = sshll.u32 [#allocation4], 4
          %s153 = int_to_ptr.vmem [resolvable:$true] %s152
          %155 = dma.hbm_to_vmem [thread:$0]  %s1, 8192, %s153, [#allocation5]
          %s156 = smul.u32 8, 16
          %s157 = smul.u32 %s156, 4
          %s158 = sshll.u32 %s157, 4
          %159 = dma.done [#allocation5], %s158
        $region32: #{tpu_custom_call.1} parent=23 // pred_fallthru
          _
        %v160 = vld [vmem:[#allocation4] sm:$0xff]
        %v161 = vld [vmem:[#allocation4 + $0x8] sm:$0xff]
        %v162 = vld [vmem:[#allocation4 + $0x10] sm:$0xff]
        %v163 = vld [vmem:[#allocation4 + $0x18] sm:$0xff]
        %v164 = vld [vmem:[#allocation4 + $0x20] sm:$0xff]
        %v165 = vld [vmem:[#allocation4 + $0x28] sm:$0xff]
        %v166 = vld [vmem:[#allocation4 + $0x30] sm:$0xff]
        %v167 = vld [vmem:[#allocation4 + $0x38] sm:$0xff]
        %v168 = vld [vmem:[#allocation4 + $0x40] sm:$0xff]
        %v169 = vld [vmem:[#allocation4 + $0x48] sm:$0xff]
        %v170 = vld [vmem:[#allocation4 + $0x50] sm:$0xff]
        %v171 = vld [vmem:[#allocation4 + $0x58] sm:$0xff]
        %v172 = vld [vmem:[#allocation4 + $0x60] sm:$0xff]
        %v173 = vld [vmem:[#allocation4 + $0x68] sm:$0xff]
        %v174 = vld [vmem:[#allocation4 + $0x70] sm:$0xff]
        %v175 = vld [vmem:[#allocation4 + $0x78] sm:$0xff]
        %v176 = vld [vmem:[#allocation4 + $0x80] sm:$0xff]
        %v177 = vld [vmem:[#allocation4 + $0x88] sm:$0xff]
        %v178 = vld [vmem:[#allocation4 + $0x90] sm:$0xff]
        %v179 = vld [vmem:[#allocation4 + $0x98] sm:$0xff]
        %v180 = vld [vmem:[#allocation4 + $0xa0] sm:$0xff]
        %v181 = vld [vmem:[#allocation4 + $0xa8] sm:$0xff]
        %v182 = vld [vmem:[#allocation4 + $0xb0] sm:$0xff]
        %v183 = vld [vmem:[#allocation4 + $0xb8] sm:$0xff]
        %v184 = vld [vmem:[#allocation4 + $0xc0] sm:$0xff]
        %v185 = vld [vmem:[#allocation4 + $0xc8] sm:$0xff]
        %v186 = vld [vmem:[#allocation4 + $0xd0] sm:$0xff]
        %v187 = vld [vmem:[#allocation4 + $0xd8] sm:$0xff]
        %v188 = vld [vmem:[#allocation4 + $0xe0] sm:$0xff]
        %v189 = vld [vmem:[#allocation4 + $0xe8] sm:$0xff]
        %v190 = vld [vmem:[#allocation4 + $0xf0] sm:$0xff]
        %v191 = vld [vmem:[#allocation4 + $0xf8] sm:$0xff]
        %v192 = vld [vmem:[#allocation4 + $0x100] sm:$0xff]
        %v193 = vld [vmem:[#allocation4 + $0x108] sm:$0xff]
        %v194 = vld [vmem:[#allocation4 + $0x110] sm:$0xff]
        %v195 = vld [vmem:[#allocation4 + $0x118] sm:$0xff]
        %v196 = vld [vmem:[#allocation4 + $0x120] sm:$0xff]
        %v197 = vld [vmem:[#allocation4 + $0x128] sm:$0xff]
        %v198 = vld [vmem:[#allocation4 + $0x130] sm:$0xff]
        %v199 = vld [vmem:[#allocation4 + $0x138] sm:$0xff]
        %v200 = vld [vmem:[#allocation4 + $0x140] sm:$0xff]
        %v201 = vld [vmem:[#allocation4 + $0x148] sm:$0xff]
        %v202 = vld [vmem:[#allocation4 + $0x150] sm:$0xff]
        %v203 = vld [vmem:[#allocation4 + $0x158] sm:$0xff]
        %v204 = vld [vmem:[#allocation4 + $0x160] sm:$0xff]
        %v205 = vld [vmem:[#allocation4 + $0x168] sm:$0xff]
        %v206 = vld [vmem:[#allocation4 + $0x170] sm:$0xff]
        %v207 = vld [vmem:[#allocation4 + $0x178] sm:$0xff]
        %v208 = vld [vmem:[#allocation4 + $0x180] sm:$0xff]
        %v209 = vld [vmem:[#allocation4 + $0x188] sm:$0xff]
        %v210 = vld [vmem:[#allocation4 + $0x190] sm:$0xff]
        %v211 = vld [vmem:[#allocation4 + $0x198] sm:$0xff]
        %v212 = vld [vmem:[#allocation4 + $0x1a0] sm:$0xff]
        %v213 = vld [vmem:[#allocation4 + $0x1a8] sm:$0xff]
        %v214 = vld [vmem:[#allocation4 + $0x1b0] sm:$0xff]
        %v215 = vld [vmem:[#allocation4 + $0x1b8] sm:$0xff]
        %v216 = vld [vmem:[#allocation4 + $0x1c0] sm:$0xff]
        %v217 = vld [vmem:[#allocation4 + $0x1c8] sm:$0xff]
        %v218 = vld [vmem:[#allocation4 + $0x1d0] sm:$0xff]
        %v219 = vld [vmem:[#allocation4 + $0x1d8] sm:$0xff]
        %v220 = vld [vmem:[#allocation4 + $0x1e0] sm:$0xff]
        %v221 = vld [vmem:[#allocation4 + $0x1e8] sm:$0xff]
        %v222 = vld [vmem:[#allocation4 + $0x1f0] sm:$0xff]
        %v223 = vld [vmem:[#allocation4 + $0x1f8] sm:$0xff]
        %v224 = vld [vmem:[#allocation2] sm:$0xff]
        %v225 = vld [vmem:[#allocation3] sm:$0xff]
        %v226 = vld [vmem:[%s118] sm:$0xff]
        %v227 = vld [vmem:[%s118 + $0x8] sm:$0xff]
        %v228 = vld [vmem:[%s118 + $0x10] sm:$0xff]
        %v229 = vld [vmem:[%s118 + $0x18] sm:$0xff]
        %230 = vmatprep.subr.mxu0 %v161
        %231 = vmatpush1.msra.mxu0 %v160
        %232 = vmatprep.subr.mxu0 %v165
        %233 = vmatpush1.msra.mxu0 %v164
        %234 = vmatprep.subr.mxu0 %v169
        %235 = vmatpush1.msra.mxu0 %v168
        %236 = vmatprep.subr.mxu0 %v173
        %237 = vmatpush1.msra.mxu0 %v172
        %238 = vmatprep.subr.mxu0 %v177
        %239 = vmatpush1.msra.mxu0 %v176
        %240 = vmatprep.subr.mxu0 %v181
        %241 = vmatpush1.msra.mxu0 %v180
        %242 = vmatprep.subr.mxu0 %v185
        %243 = vmatpush1.msra.mxu0 %v184
        %244 = vmatprep.subr.mxu0 %v189
        %245 = vmatpush1.msra.mxu0 %v188
        %246 = vmatprep.subr.mxu0 %v193
        %247 = vmatpush1.msra.mxu0 %v192
        %248 = vmatprep.subr.mxu0 %v197
        %249 = vmatpush1.msra.mxu0 %v196
        %250 = vmatprep.subr.mxu0 %v201
        %251 = vmatpush1.msra.mxu0 %v200
        %252 = vmatprep.subr.mxu0 %v205
        %253 = vmatpush1.msra.mxu0 %v204
        %254 = vmatprep.subr.mxu0 %v209
        %255 = vmatpush1.msra.mxu0 %v208
        %256 = vmatprep.subr.mxu0 %v213
        %257 = vmatpush1.msra.mxu0 %v212
        %258 = vmatprep.subr.mxu0 %v217
        %259 = vmatpush1.msra.mxu0 %v216
        %260 = vmatprep.subr.mxu0 %v221
        %261 = vmatpush1.msra.mxu0 %v220
        %262 = vmatprep.subr.mxu0 0.0
        %263 = vmatpush1.msra.mxu0 0.0
        %264 = vmatprep.subr.mxu0 0.0
        %265 = vmatpush1.msra.mxu0 0.0
        %266 = vmatprep.subr.mxu0 0.0
        %267 = vmatpush1.msra.mxu0 0.0
        %268 = vmatprep.subr.mxu0 0.0
        %269 = vmatpush1.msra.mxu0 0.0
        %270 = vmatprep.subr.mxu0 0.0
        %271 = vmatpush1.msra.mxu0 0.0
        %272 = vmatprep.subr.mxu0 0.0
        %273 = vmatpush1.msra.mxu0 0.0
        %274 = vmatprep.subr.mxu0 0.0
        %275 = vmatpush1.msra.mxu0 0.0
        %276 = vmatprep.subr.mxu0 0.0
        %277 = vmatpush1.msra.mxu0 0.0
        %278 = vmatprep.subr.mxu0 0.0
        %279 = vmatpush1.msra.mxu0 0.0
        %280 = vmatprep.subr.mxu0 0.0
        %281 = vmatpush1.msra.mxu0 0.0
        %282 = vmatprep.subr.mxu0 0.0
        %283 = vmatpush1.msra.mxu0 0.0
        %284 = vmatprep.subr.mxu0 0.0
        %285 = vmatpush1.msra.mxu0 0.0
        %286 = vmatprep.subr.mxu0 0.0
        %287 = vmatpush1.msra.mxu0 0.0
        %288 = vmatprep.subr.mxu0 0.0
        %289 = vmatpush1.msra.mxu0 0.0
        %290 = vmatprep.subr.mxu0 0.0
        %291 = vmatpush1.msra.mxu0 0.0
        %292 = vmatprep.subr.mxu0 0.0
        %293 = vmatpush1.msra.mxu0 0.0
        %294 = vmatprep.mubr.f32.mxu0 0.0
        %295 = vmatmul.mubr.f32.gmra.mrb[0].mxu0 %v224
        %v296 = vpop.f32.mrb[0].mxu0
        %v297 = vadd.f32 0.0, %v296
        %v298 = vpop.f32.mrb[0].mxu0
        %v299 = vadd.f32 0.0, %v298
        %300 = vdwg.mxu0
        %301 = vmatprep.subr.mxu0 %v163
        %302 = vmatpush1.msra.mxu0 %v162
        %303 = vmatprep.subr.mxu0 %v167
        %304 = vmatpush1.msra.mxu0 %v166
        %305 = vmatprep.subr.mxu0 %v171
        %306 = vmatpush1.msra.mxu0 %v170
        %307 = vmatprep.subr.mxu0 %v175
        %308 = vmatpush1.msra.mxu0 %v174
        %309 = vmatprep.subr.mxu0 %v179
        %310 = vmatpush1.msra.mxu0 %v178
        %311 = vmatprep.subr.mxu0 %v183
        %312 = vmatpush1.msra.mxu0 %v182
        %313 = vmatprep.subr.mxu0 %v187
        %314 = vmatpush1.msra.mxu0 %v186
        %315 = vmatprep.subr.mxu0 %v191
        %316 = vmatpush1.msra.mxu0 %v190
        %317 = vmatprep.subr.mxu0 %v195
        %318 = vmatpush1.msra.mxu0 %v194
        %319 = vmatprep.subr.mxu0 %v199
        %320 = vmatpush1.msra.mxu0 %v198
        %321 = vmatprep.subr.mxu0 %v203
        %322 = vmatpush1.msra.mxu0 %v202
        %323 = vmatprep.subr.mxu0 %v207
        %324 = vmatpush1.msra.mxu0 %v206
        %325 = vmatprep.subr.mxu0 %v211
        %326 = vmatpush1.msra.mxu0 %v210
        %327 = vmatprep.subr.mxu0 %v215
        %328 = vmatpush1.msra.mxu0 %v214
        %329 = vmatprep.subr.mxu0 %v219
        %330 = vmatpush1.msra.mxu0 %v218
        %331 = vmatprep.subr.mxu0 %v223
        %332 = vmatpush1.msra.mxu0 %v222
        %333 = vmatprep.subr.mxu0 0.0
        %334 = vmatpush1.msra.mxu0 0.0
        %335 = vmatprep.subr.mxu0 0.0
        %336 = vmatpush1.msra.mxu0 0.0
        %337 = vmatprep.subr.mxu0 0.0
        %338 = vmatpush1.msra.mxu0 0.0
        %339 = vmatprep.subr.mxu0 0.0
        %340 = vmatpush1.msra.mxu0 0.0
        %341 = vmatprep.subr.mxu0 0.0
        %342 = vmatpush1.msra.mxu0 0.0
        %343 = vmatprep.subr.mxu0 0.0
        %344 = vmatpush1.msra.mxu0 0.0
        %345 = vmatprep.subr.mxu0 0.0
        %346 = vmatpush1.msra.mxu0 0.0
        %347 = vmatprep.subr.mxu0 0.0
        %348 = vmatpush1.msra.mxu0 0.0
        %349 = vmatprep.subr.mxu0 0.0
        %350 = vmatpush1.msra.mxu0 0.0
        %351 = vmatprep.subr.mxu0 0.0
        %352 = vmatpush1.msra.mxu0 0.0
        %353 = vmatprep.subr.mxu0 0.0
        %354 = vmatpush1.msra.mxu0 0.0
        %355 = vmatprep.subr.mxu0 0.0
        %356 = vmatpush1.msra.mxu0 0.0
        %357 = vmatprep.subr.mxu0 0.0
        %358 = vmatpush1.msra.mxu0 0.0
        %359 = vmatprep.subr.mxu0 0.0
        %360 = vmatpush1.msra.mxu0 0.0
        %361 = vmatprep.subr.mxu0 0.0
        %362 = vmatpush1.msra.mxu0 0.0
        %363 = vmatprep.subr.mxu0 0.0
        %364 = vmatpush1.msra.mxu0 0.0
        %365 = vmatprep.mubr.f32.mxu0 0.0
        %366 = vmatmul.mubr.f32.gmra.mrb[0].mxu0 %v224
        %v367 = vpop.f32.mrb[0].mxu0
        %v368 = vadd.f32 0.0, %v367
        %v369 = vpop.f32.mrb[0].mxu0
        %v370 = vadd.f32 0.0, %v369
        %371 = vdwg.mxu0
        %v372 = vadd.f32 %v226, %v297
        %v373 = vadd.f32 %v227, %v299
        %v374 = vadd.f32 %v228, %v368
        %v375 = vadd.f32 %v229, %v370
        %v376 = vxor.u32 %v372, 2147483648
        %v377 = vmul.f32 %v376, 1.442695
        %v378 = vpow.pop %v377
        %v379 = vadd.f32 %v378, 1.0
        %v380 = vrcp.pop %v379
        %v381 = vmul.f32 1.0, %v380
        %v382 = vxor.u32 %v373, 2147483648
        %v383 = vmul.f32 %v382, 1.442695
        %v384 = vpow.pop %v383
        %v385 = vadd.f32 %v384, 1.0
        %v386 = vrcp.pop %v385
        %v387 = vmul.f32 1.0, %v386
        %v388 = vtanh.pop %v374
        %v389 = vxor.u32 %v375, 2147483648
        %v390 = vmul.f32 %v389, 1.442695
        %v391 = vpow.pop %v390
        %v392 = vadd.f32 %v391, 1.0
        %v393 = vrcp.pop %v392
        %v394 = vmul.f32 1.0, %v393
        %v395 = vmul.f32 %v387, %v225
        %v396 = vmul.f32 %v381, %v388
        %v397 = vadd.f32 %v395, %v396
        %v398 = vtanh.pop %v397
        %v399 = vmul.f32 %v394, %v398
        %400 = vst [vmem:[#allocation3] sm:$0xff] %v397
        %401 = vst [vmem:[#allocation2] sm:$0xff] %v399
        %402 = vst [vmem:[%s136] sm:$0xff] %v399
        %v403 = vld [vmem:[#allocation2] sm:$0xff]
        %v404 = vld [vmem:[#allocation3] sm:$0xff]
        %s405 = scalar_lea.vmem %s118, 32 [#allocation6]
        %v406 = vld [vmem:[%s405] sm:$0xff]
        %v407 = vld [vmem:[%s405 + $0x8] sm:$0xff]
        %v408 = vld [vmem:[%s405 + $0x10] sm:$0xff]
        %v409 = vld [vmem:[%s405 + $0x18] sm:$0xff]
        %410 = vmatprep.subr.mxu0 %v161
        %411 = vmatpush1.msra.mxu0 %v160
        %412 = vmatprep.subr.mxu0 %v165
        %413 = vmatpush1.msra.mxu0 %v164
        %414 = vmatprep.subr.mxu0 %v169
        %415 = vmatpush1.msra.mxu0 %v168
        %416 = vmatprep.subr.mxu0 %v173
        %417 = vmatpush1.msra.mxu0 %v172
        %418 = vmatprep.subr.mxu0 %v177
        %419 = vmatpush1.msra.mxu0 %v176
        %420 = vmatprep.subr.mxu0 %v181
        %421 = vmatpush1.msra.mxu0 %v180
        %422 = vmatprep.subr.mxu0 %v185
        %423 = vmatpush1.msra.mxu0 %v184
        %424 = vmatprep.subr.mxu0 %v189
        %425 = vmatpush1.msra.mxu0 %v188
        %426 = vmatprep.subr.mxu0 %v193
        %427 = vmatpush1.msra.mxu0 %v192
        %428 = vmatprep.subr.mxu0 %v197
        %429 = vmatpush1.msra.mxu0 %v196
        %430 = vmatprep.subr.mxu0 %v201
        %431 = vmatpush1.msra.mxu0 %v200
        %432 = vmatprep.subr.mxu0 %v205
        %433 = vmatpush1.msra.mxu0 %v204
        %434 = vmatprep.subr.mxu0 %v209
        %435 = vmatpush1.msra.mxu0 %v208
        %436 = vmatprep.subr.mxu0 %v213
        %437 = vmatpush1.msra.mxu0 %v212
        %438 = vmatprep.subr.mxu0 %v217
        %439 = vmatpush1.msra.mxu0 %v216
        %440 = vmatprep.subr.mxu0 %v221
        %441 = vmatpush1.msra.mxu0 %v220
        %442 = vmatprep.subr.mxu0 0.0
        %443 = vmatpush1.msra.mxu0 0.0
        %444 = vmatprep.subr.mxu0 0.0
        %445 = vmatpush1.msra.mxu0 0.0
        %446 = vmatprep.subr.mxu0 0.0
        %447 = vmatpush1.msra.mxu0 0.0
        %448 = vmatprep.subr.mxu0 0.0
        %449 = vmatpush1.msra.mxu0 0.0
        %450 = vmatprep.subr.mxu0 0.0
        %451 = vmatpush1.msra.mxu0 0.0
        %452 = vmatprep.subr.mxu0 0.0
        %453 = vmatpush1.msra.mxu0 0.0
        %454 = vmatprep.subr.mxu0 0.0
        %455 = vmatpush1.msra.mxu0 0.0
        %456 = vmatprep.subr.mxu0 0.0
        %457 = vmatpush1.msra.mxu0 0.0
        %458 = vmatprep.subr.mxu0 0.0
        %459 = vmatpush1.msra.mxu0 0.0
        %460 = vmatprep.subr.mxu0 0.0
        %461 = vmatpush1.msra.mxu0 0.0
        %462 = vmatprep.subr.mxu0 0.0
        %463 = vmatpush1.msra.mxu0 0.0
        %464 = vmatprep.subr.mxu0 0.0
        %465 = vmatpush1.msra.mxu0 0.0
        %466 = vmatprep.subr.mxu0 0.0
        %467 = vmatpush1.msra.mxu0 0.0
        %468 = vmatprep.subr.mxu0 0.0
        %469 = vmatpush1.msra.mxu0 0.0
        %470 = vmatprep.subr.mxu0 0.0
        %471 = vmatpush1.msra.mxu0 0.0
        %472 = vmatprep.subr.mxu0 0.0
        %473 = vmatpush1.msra.mxu0 0.0
        %474 = vmatprep.mubr.f32.mxu0 0.0
        %475 = vmatmul.mubr.f32.gmra.mrb[0].mxu0 %v403
        %v476 = vpop.f32.mrb[0].mxu0
        %v477 = vadd.f32 0.0, %v476
        %v478 = vpop.f32.mrb[0].mxu0
        %v479 = vadd.f32 0.0, %v478
        %480 = vdwg.mxu0
        %481 = vmatprep.subr.mxu0 %v163
        %482 = vmatpush1.msra.mxu0 %v162
        %483 = vmatprep.subr.mxu0 %v167
        %484 = vmatpush1.msra.mxu0 %v166
        %485 = vmatprep.subr.mxu0 %v171
        %486 = vmatpush1.msra.mxu0 %v170
        %487 = vmatprep.subr.mxu0 %v175
        %488 = vmatpush1.msra.mxu0 %v174
        %489 = vmatprep.subr.mxu0 %v179
        %490 = vmatpush1.msra.mxu0 %v178
        %491 = vmatprep.subr.mxu0 %v183
        %492 = vmatpush1.msra.mxu0 %v182
        %493 = vmatprep.subr.mxu0 %v187
        %494 = vmatpush1.msra.mxu0 %v186
        %495 = vmatprep.subr.mxu0 %v191
        %496 = vmatpush1.msra.mxu0 %v190
        %497 = vmatprep.subr.mxu0 %v195
        %498 = vmatpush1.msra.mxu0 %v194
        %499 = vmatprep.subr.mxu0 %v199
        %500 = vmatpush1.msra.mxu0 %v198
        %501 = vmatprep.subr.mxu0 %v203
        %502 = vmatpush1.msra.mxu0 %v202
        %503 = vmatprep.subr.mxu0 %v207
        %504 = vmatpush1.msra.mxu0 %v206
        %505 = vmatprep.subr.mxu0 %v211
        %506 = vmatpush1.msra.mxu0 %v210
        %507 = vmatprep.subr.mxu0 %v215
        %508 = vmatpush1.msra.mxu0 %v214
        %509 = vmatprep.subr.mxu0 %v219
        %510 = vmatpush1.msra.mxu0 %v218
        %511 = vmatprep.subr.mxu0 %v223
        %512 = vmatpush1.msra.mxu0 %v222
        %513 = vmatprep.subr.mxu0 0.0
        %514 = vmatpush1.msra.mxu0 0.0
        %515 = vmatprep.subr.mxu0 0.0
        %516 = vmatpush1.msra.mxu0 0.0
        %517 = vmatprep.subr.mxu0 0.0
        %518 = vmatpush1.msra.mxu0 0.0
        %519 = vmatprep.subr.mxu0 0.0
        %520 = vmatpush1.msra.mxu0 0.0
        %521 = vmatprep.subr.mxu0 0.0
        %522 = vmatpush1.msra.mxu0 0.0
        %523 = vmatprep.subr.mxu0 0.0
        %524 = vmatpush1.msra.mxu0 0.0
        %525 = vmatprep.subr.mxu0 0.0
        %526 = vmatpush1.msra.mxu0 0.0
        %527 = vmatprep.subr.mxu0 0.0
        %528 = vmatpush1.msra.mxu0 0.0
        %529 = vmatprep.subr.mxu0 0.0
        %530 = vmatpush1.msra.mxu0 0.0
        %531 = vmatprep.subr.mxu0 0.0
        %532 = vmatpush1.msra.mxu0 0.0
        %533 = vmatprep.subr.mxu0 0.0
        %534 = vmatpush1.msra.mxu0 0.0
        %535 = vmatprep.subr.mxu0 0.0
        %536 = vmatpush1.msra.mxu0 0.0
        %537 = vmatprep.subr.mxu0 0.0
        %538 = vmatpush1.msra.mxu0 0.0
        %539 = vmatprep.subr.mxu0 0.0
        %540 = vmatpush1.msra.mxu0 0.0
        %541 = vmatprep.subr.mxu0 0.0
        %542 = vmatpush1.msra.mxu0 0.0
        %543 = vmatprep.subr.mxu0 0.0
        %544 = vmatpush1.msra.mxu0 0.0
        %545 = vmatprep.mubr.f32.mxu0 0.0
        %546 = vmatmul.mubr.f32.gmra.mrb[0].mxu0 %v403
        %v547 = vpop.f32.mrb[0].mxu0
        %v548 = vadd.f32 0.0, %v547
        %v549 = vpop.f32.mrb[0].mxu0
        %v550 = vadd.f32 0.0, %v549
        %551 = vdwg.mxu0
        %v552 = vadd.f32 %v406, %v477
        %v553 = vadd.f32 %v407, %v479
        %v554 = vadd.f32 %v408, %v548
        %v555 = vadd.f32 %v409, %v550
        %v556 = vxor.u32 %v552, 2147483648
        %v557 = vmul.f32 %v556, 1.442695
        %v558 = vpow.pop %v557
        %v559 = vadd.f32 %v558, 1.0
        %v560 = vrcp.pop %v559
        %v561 = vmul.f32 1.0, %v560
        %v562 = vxor.u32 %v553, 2147483648
        %v563 = vmul.f32 %v562, 1.442695
        %v564 = vpow.pop %v563
        %v565 = vadd.f32 %v564, 1.0
        %v566 = vrcp.pop %v565
        %v567 = vmul.f32 1.0, %v566
        %v568 = vtanh.pop %v554
        %v569 = vxor.u32 %v555, 2147483648
        %v570 = vmul.f32 %v569, 1.442695
        %v571 = vpow.pop %v570
        %v572 = vadd.f32 %v571, 1.0
        %v573 = vrcp.pop %v572
        %v574 = vmul.f32 1.0, %v573
        %v575 = vmul.f32 %v567, %v404
        %v576 = vmul.f32 %v561, %v568
        %v577 = vadd.f32 %v575, %v576
        %v578 = vtanh.pop %v577
        %v579 = vmul.f32 %v574, %v578
        %580 = vst [vmem:[#allocation3] sm:$0xff] %v577
        %581 = vst [vmem:[#allocation2] sm:$0xff] %v579
        %s582 = scalar_lea.vmem %s136, 8 [#allocation9]
        %583 = vst [vmem:[%s582] sm:$0xff] %v579
        %v584 = vld [vmem:[#allocation2] sm:$0xff]
        %v585 = vld [vmem:[#allocation3] sm:$0xff]
        %s586 = scalar_lea.vmem %s118, 64 [#allocation6]
        %v587 = vld [vmem:[%s586] sm:$0xff]
        %v588 = vld [vmem:[%s586 + $0x8] sm:$0xff]
        %v589 = vld [vmem:[%s586 + $0x10] sm:$0xff]
        %v590 = vld [vmem:[%s586 + $0x18] sm:$0xff]
        %591 = vmatprep.subr.mxu0 %v161
        %592 = vmatpush1.msra.mxu0 %v160
        %593 = vmatprep.subr.mxu0 %v165
        %594 = vmatpush1.msra.mxu0 %v164
        %595 = vmatprep.subr.mxu0 %v169
        %596 = vmatpush1.msra.mxu0 %v168
        %597 = vmatprep.subr.mxu0 %v173
        %598 = vmatpush1.msra.mxu0 %v172
        %599 = vmatprep.subr.mxu0 %v177
        %600 = vmatpush1.msra.mxu0 %v176
        %601 = vmatprep.subr.mxu0 %v181
        %602 = vmatpush1.msra.mxu0 %v180
        %603 = vmatprep.subr.mxu0 %v185
        %604 = vmatpush1.msra.mxu0 %v184
        %605 = vmatprep.subr.mxu0 %v189
        %606 = vmatpush1.msra.mxu0 %v188
        %607 = vmatprep.subr.mxu0 %v193
        %608 = vmatpush1.msra.mxu0 %v192
        %609 = vmatprep.subr.mxu0 %v197
        %610 = vmatpush1.msra.mxu0 %v196
        %611 = vmatprep.subr.mxu0 %v201
        %612 = vmatpush1.msra.mxu0 %v200
        %613 = vmatprep.subr.mxu0 %v205
        %614 = vmatpush1.msra.mxu0 %v204
        %615 = vmatprep.subr.mxu0 %v209
        %616 = vmatpush1.msra.mxu0 %v208
        %617 = vmatprep.subr.mxu0 %v213
        %618 = vmatpush1.msra.mxu0 %v212
        %619 = vmatprep.subr.mxu0 %v217
        %620 = vmatpush1.msra.mxu0 %v216
        %621 = vmatprep.subr.mxu0 %v221
        %622 = vmatpush1.msra.mxu0 %v220
        %623 = vmatprep.subr.mxu0 0.0
        %624 = vmatpush1.msra.mxu0 0.0
        %625 = vmatprep.subr.mxu0 0.0
        %626 = vmatpush1.msra.mxu0 0.0
        %627 = vmatprep.subr.mxu0 0.0
        %628 = vmatpush1.msra.mxu0 0.0
        %629 = vmatprep.subr.mxu0 0.0
        %630 = vmatpush1.msra.mxu0 0.0
        %631 = vmatprep.subr.mxu0 0.0
        %632 = vmatpush1.msra.mxu0 0.0
        %633 = vmatprep.subr.mxu0 0.0
        %634 = vmatpush1.msra.mxu0 0.0
        %635 = vmatprep.subr.mxu0 0.0
        %636 = vmatpush1.msra.mxu0 0.0
        %637 = vmatprep.subr.mxu0 0.0
        %638 = vmatpush1.msra.mxu0 0.0
        %639 = vmatprep.subr.mxu0 0.0
        %640 = vmatpush1.msra.mxu0 0.0
        %641 = vmatprep.subr.mxu0 0.0
        %642 = vmatpush1.msra.mxu0 0.0
        %643 = vmatprep.subr.mxu0 0.0
        %644 = vmatpush1.msra.mxu0 0.0
        %645 = vmatprep.subr.mxu0 0.0
        %646 = vmatpush1.msra.mxu0 0.0
        %647 = vmatprep.subr.mxu0 0.0
        %648 = vmatpush1.msra.mxu0 0.0
        %649 = vmatprep.subr.mxu0 0.0
        %650 = vmatpush1.msra.mxu0 0.0
        %651 = vmatprep.subr.mxu0 0.0
        %652 = vmatpush1.msra.mxu0 0.0
        %653 = vmatprep.subr.mxu0 0.0
        %654 = vmatpush1.msra.mxu0 0.0
        %655 = vmatprep.mubr.f32.mxu0 0.0
        %656 = vmatmul.mubr.f32.gmra.mrb[0].mxu0 %v584
        %v657 = vpop.f32.mrb[0].mxu0
        %v658 = vadd.f32 0.0, %v657
        %v659 = vpop.f32.mrb[0].mxu0
        %v660 = vadd.f32 0.0, %v659
        %661 = vdwg.mxu0
        %662 = vmatprep.subr.mxu0 %v163
        %663 = vmatpush1.msra.mxu0 %v162
        %664 = vmatprep.subr.mxu0 %v167
        %665 = vmatpush1.msra.mxu0 %v166
        %666 = vmatprep.subr.mxu0 %v171
        %667 = vmatpush1.msra.mxu0 %v170
        %668 = vmatprep.subr.mxu0 %v175
        %669 = vmatpush1.msra.mxu0 %v174
        %670 = vmatprep.subr.mxu0 %v179
        %671 = vmatpush1.msra.mxu0 %v178
        %672 = vmatprep.subr.mxu0 %v183
        %673 = vmatpush1.msra.mxu0 %v182
        %674 = vmatprep.subr.mxu0 %v187
        %675 = vmatpush1.msra.mxu0 %v186
        %676 = vmatprep.subr.mxu0 %v191
        %677 = vmatpush1.msra.mxu0 %v190
        %678 = vmatprep.subr.mxu0 %v195
        %679 = vmatpush1.msra.mxu0 %v194
        %680 = vmatprep.subr.mxu0 %v199
        %681 = vmatpush1.msra.mxu0 %v198
        %682 = vmatprep.subr.mxu0 %v203
        %683 = vmatpush1.msra.mxu0 %v202
        %684 = vmatprep.subr.mxu0 %v207
        %685 = vmatpush1.msra.mxu0 %v206
        %686 = vmatprep.subr.mxu0 %v211
        %687 = vmatpush1.msra.mxu0 %v210
        %688 = vmatprep.subr.mxu0 %v215
        %689 = vmatpush1.msra.mxu0 %v214
        %690 = vmatprep.subr.mxu0 %v219
        %691 = vmatpush1.msra.mxu0 %v218
        %692 = vmatprep.subr.mxu0 %v223
        %693 = vmatpush1.msra.mxu0 %v222
        %694 = vmatprep.subr.mxu0 0.0
        %695 = vmatpush1.msra.mxu0 0.0
        %696 = vmatprep.subr.mxu0 0.0
        %697 = vmatpush1.msra.mxu0 0.0
        %698 = vmatprep.subr.mxu0 0.0
        %699 = vmatpush1.msra.mxu0 0.0
        %700 = vmatprep.subr.mxu0 0.0
        %701 = vmatpush1.msra.mxu0 0.0
        %702 = vmatprep.subr.mxu0 0.0
        %703 = vmatpush1.msra.mxu0 0.0
        %704 = vmatprep.subr.mxu0 0.0
        %705 = vmatpush1.msra.mxu0 0.0
        %706 = vmatprep.subr.mxu0 0.0
        %707 = vmatpush1.msra.mxu0 0.0
        %708 = vmatprep.subr.mxu0 0.0
        %709 = vmatpush1.msra.mxu0 0.0
        %710 = vmatprep.subr.mxu0 0.0
        %711 = vmatpush1.msra.mxu0 0.0
        %712 = vmatprep.subr.mxu0 0.0
        %713 = vmatpush1.msra.mxu0 0.0
        %714 = vmatprep.subr.mxu0 0.0
        %715 = vmatpush1.msra.mxu0 0.0
        %716 = vmatprep.subr.mxu0 0.0
        %717 = vmatpush1.msra.mxu0 0.0
        %718 = vmatprep.subr.mxu0 0.0
        %719 = vmatpush1.msra.mxu0 0.0
        %720 = vmatprep.subr.mxu0 0.0
        %721 = vmatpush1.msra.mxu0 0.0
        %722 = vmatprep.subr.mxu0 0.0
        %723 = vmatpush1.msra.mxu0 0.0
        %724 = vmatprep.subr.mxu0 0.0
        %725 = vmatpush1.msra.mxu0 0.0
        %726 = vmatprep.mubr.f32.mxu0 0.0
        %727 = vmatmul.mubr.f32.gmra.mrb[0].mxu0 %v584
        %v728 = vpop.f32.mrb[0].mxu0
        %v729 = vadd.f32 0.0, %v728
        %v730 = vpop.f32.mrb[0].mxu0
        %v731 = vadd.f32 0.0, %v730
        %732 = vdwg.mxu0
        %v733 = vadd.f32 %v587, %v658
        %v734 = vadd.f32 %v588, %v660
        %v735 = vadd.f32 %v589, %v729
        %v736 = vadd.f32 %v590, %v731
        %v737 = vxor.u32 %v733, 2147483648
        %v738 = vmul.f32 %v737, 1.442695
        %v739 = vpow.pop %v738
        %v740 = vadd.f32 %v739, 1.0
        %v741 = vrcp.pop %v740
        %v742 = vmul.f32 1.0, %v741
        %v743 = vxor.u32 %v734, 2147483648
        %v744 = vmul.f32 %v743, 1.442695
        %v745 = vpow.pop %v744
        %v746 = vadd.f32 %v745, 1.0
        %v747 = vrcp.pop %v746
        %v748 = vmul.f32 1.0, %v747
        %v749 = vtanh.pop %v735
        %v750 = vxor.u32 %v736, 2147483648
        %v751 = vmul.f32 %v750, 1.442695
        %v752 = vpow.pop %v751
        %v753 = vadd.f32 %v752, 1.0
        %v754 = vrcp.pop %v753
        %v755 = vmul.f32 1.0, %v754
        %v756 = vmul.f32 %v748, %v585
        %v757 = vmul.f32 %v742, %v749
        %v758 = vadd.f32 %v756, %v757
        %v759 = vtanh.pop %v758
        %v760 = vmul.f32 %v755, %v759
        %761 = vst [vmem:[#allocation3] sm:$0xff] %v758
        %762 = vst [vmem:[#allocation2] sm:$0xff] %v760
        %s763 = scalar_lea.vmem %s136, 16 [#allocation9]
        %764 = vst [vmem:[%s763] sm:$0xff] %v760
        %v765 = vld [vmem:[#allocation2] sm:$0xff]
        %v766 = vld [vmem:[#allocation3] sm:$0xff]
        %s767 = scalar_lea.vmem %s118, 96 [#allocation6]
        %v768 = vld [vmem:[%s767] sm:$0xff]
        %v769 = vld [vmem:[%s767 + $0x8] sm:$0xff]
        %v770 = vld [vmem:[%s767 + $0x10] sm:$0xff]
        %v771 = vld [vmem:[%s767 + $0x18] sm:$0xff]
        %772 = vmatprep.subr.mxu0 %v161
        %773 = vmatpush1.msra.mxu0 %v160
        %774 = vmatprep.subr.mxu0 %v165
        %775 = vmatpush1.msra.mxu0 %v164
        %776 = vmatprep.subr.mxu0 %v169
        %777 = vmatpush1.msra.mxu0 %v168
        %778 = vmatprep.subr.mxu0 %v173
        %779 = vmatpush1.msra.mxu0 %v172
        %780 = vmatprep.subr.mxu0 %v177
        %781 = vmatpush1.msra.mxu0 %v176
        %782 = vmatprep.subr.mxu0 %v181
        %783 = vmatpush1.msra.mxu0 %v180
        %784 = vmatprep.subr.mxu0 %v185
        %785 = vmatpush1.msra.mxu0 %v184
        %786 = vmatprep.subr.mxu0 %v189
        %787 = vmatpush1.msra.mxu0 %v188
        %788 = vmatprep.subr.mxu0 %v193
        %789 = vmatpush1.msra.mxu0 %v192
        %790 = vmatprep.subr.mxu0 %v197
        %791 = vmatpush1.msra.mxu0 %v196
        %792 = vmatprep.subr.mxu0 %v201
        %793 = vmatpush1.msra.mxu0 %v200
        %794 = vmatprep.subr.mxu0 %v205
        %795 = vmatpush1.msra.mxu0 %v204
        %796 = vmatprep.subr.mxu0 %v209
        %797 = vmatpush1.msra.mxu0 %v208
        %798 = vmatprep.subr.mxu0 %v213
        %799 = vmatpush1.msra.mxu0 %v212
        %800 = vmatprep.subr.mxu0 %v217
        %801 = vmatpush1.msra.mxu0 %v216
        %802 = vmatprep.subr.mxu0 %v221
        %803 = vmatpush1.msra.mxu0 %v220
        %804 = vmatprep.subr.mxu0 0.0
        %805 = vmatpush1.msra.mxu0 0.0
        %806 = vmatprep.subr.mxu0 0.0
        %807 = vmatpush1.msra.mxu0 0.0
        %808 = vmatprep.subr.mxu0 0.0
        %809 = vmatpush1.msra.mxu0 0.0
        %810 = vmatprep.subr.mxu0 0.0
        %811 = vmatpush1.msra.mxu0 0.0
        %812 = vmatprep.subr.mxu0 0.0
        %813 = vmatpush1.msra.mxu0 0.0
        %814 = vmatprep.subr.mxu0 0.0
        %815 = vmatpush1.msra.mxu0 0.0
        %816 = vmatprep.subr.mxu0 0.0
        %817 = vmatpush1.msra.mxu0 0.0
        %818 = vmatprep.subr.mxu0 0.0
        %819 = vmatpush1.msra.mxu0 0.0
        %820 = vmatprep.subr.mxu0 0.0
        %821 = vmatpush1.msra.mxu0 0.0
        %822 = vmatprep.subr.mxu0 0.0
        %823 = vmatpush1.msra.mxu0 0.0
        %824 = vmatprep.subr.mxu0 0.0
        %825 = vmatpush1.msra.mxu0 0.0
        %826 = vmatprep.subr.mxu0 0.0
        %827 = vmatpush1.msra.mxu0 0.0
        %828 = vmatprep.subr.mxu0 0.0
        %829 = vmatpush1.msra.mxu0 0.0
        %830 = vmatprep.subr.mxu0 0.0
        %831 = vmatpush1.msra.mxu0 0.0
        %832 = vmatprep.subr.mxu0 0.0
        %833 = vmatpush1.msra.mxu0 0.0
        %834 = vmatprep.subr.mxu0 0.0
        %835 = vmatpush1.msra.mxu0 0.0
        %836 = vmatprep.mubr.f32.mxu0 0.0
        %837 = vmatmul.mubr.f32.gmra.mrb[0].mxu0 %v765
        %v838 = vpop.f32.mrb[0].mxu0
        %v839 = vadd.f32 0.0, %v838
        %v840 = vpop.f32.mrb[0].mxu0
        %v841 = vadd.f32 0.0, %v840
        %842 = vdwg.mxu0
        %843 = vmatprep.subr.mxu0 %v163
        %844 = vmatpush1.msra.mxu0 %v162
        %845 = vmatprep.subr.mxu0 %v167
        %846 = vmatpush1.msra.mxu0 %v166
        %847 = vmatprep.subr.mxu0 %v171
        %848 = vmatpush1.msra.mxu0 %v170
        %849 = vmatprep.subr.mxu0 %v175
        %850 = vmatpush1.msra.mxu0 %v174
        %851 = vmatprep.subr.mxu0 %v179
        %852 = vmatpush1.msra.mxu0 %v178
        %853 = vmatprep.subr.mxu0 %v183
        %854 = vmatpush1.msra.mxu0 %v182
        %855 = vmatprep.subr.mxu0 %v187
        %856 = vmatpush1.msra.mxu0 %v186
        %857 = vmatprep.subr.mxu0 %v191
        %858 = vmatpush1.msra.mxu0 %v190
        %859 = vmatprep.subr.mxu0 %v195
        %860 = vmatpush1.msra.mxu0 %v194
        %861 = vmatprep.subr.mxu0 %v199
        %862 = vmatpush1.msra.mxu0 %v198
        %863 = vmatprep.subr.mxu0 %v203
        %864 = vmatpush1.msra.mxu0 %v202
        %865 = vmatprep.subr.mxu0 %v207
        %866 = vmatpush1.msra.mxu0 %v206
        %867 = vmatprep.subr.mxu0 %v211
        %868 = vmatpush1.msra.mxu0 %v210
        %869 = vmatprep.subr.mxu0 %v215
        %870 = vmatpush1.msra.mxu0 %v214
        %871 = vmatprep.subr.mxu0 %v219
        %872 = vmatpush1.msra.mxu0 %v218
        %873 = vmatprep.subr.mxu0 %v223
        %874 = vmatpush1.msra.mxu0 %v222
        %875 = vmatprep.subr.mxu0 0.0
        %876 = vmatpush1.msra.mxu0 0.0
        %877 = vmatprep.subr.mxu0 0.0
        %878 = vmatpush1.msra.mxu0 0.0
        %879 = vmatprep.subr.mxu0 0.0
        %880 = vmatpush1.msra.mxu0 0.0
        %881 = vmatprep.subr.mxu0 0.0
        %882 = vmatpush1.msra.mxu0 0.0
        %883 = vmatprep.subr.mxu0 0.0
        %884 = vmatpush1.msra.mxu0 0.0
        %885 = vmatprep.subr.mxu0 0.0
        %886 = vmatpush1.msra.mxu0 0.0
        %887 = vmatprep.subr.mxu0 0.0
        %888 = vmatpush1.msra.mxu0 0.0
        %889 = vmatprep.subr.mxu0 0.0
        %890 = vmatpush1.msra.mxu0 0.0
        %891 = vmatprep.subr.mxu0 0.0
        %892 = vmatpush1.msra.mxu0 0.0
        %893 = vmatprep.subr.mxu0 0.0
        %894 = vmatpush1.msra.mxu0 0.0
        %895 = vmatprep.subr.mxu0 0.0
        %896 = vmatpush1.msra.mxu0 0.0
        %897 = vmatprep.subr.mxu0 0.0
        %898 = vmatpush1.msra.mxu0 0.0
        %899 = vmatprep.subr.mxu0 0.0
        %900 = vmatpush1.msra.mxu0 0.0
        %901 = vmatprep.subr.mxu0 0.0
        %902 = vmatpush1.msra.mxu0 0.0
        %903 = vmatprep.subr.mxu0 0.0
        %904 = vmatpush1.msra.mxu0 0.0
        %905 = vmatprep.subr.mxu0 0.0
        %906 = vmatpush1.msra.mxu0 0.0
        %907 = vmatprep.mubr.f32.mxu0 0.0
        %908 = vmatmul.mubr.f32.gmra.mrb[0].mxu0 %v765
        %v909 = vpop.f32.mrb[0].mxu0
        %v910 = vadd.f32 0.0, %v909
        %v911 = vpop.f32.mrb[0].mxu0
        %v912 = vadd.f32 0.0, %v911
        %913 = vdwg.mxu0
        %v914 = vadd.f32 %v768, %v839
        %v915 = vadd.f32 %v769, %v841
        %v916 = vadd.f32 %v770, %v910
        %v917 = vadd.f32 %v771, %v912
        %v918 = vxor.u32 %v914, 2147483648
        %v919 = vmul.f32 %v918, 1.442695
        %v920 = vpow.pop %v919
        %v921 = vadd.f32 %v920, 1.0
        %v922 = vrcp.pop %v921
        %v923 = vmul.f32 1.0, %v922
        %v924 = vxor.u32 %v915, 2147483648
        %v925 = vmul.f32 %v924, 1.442695
        %v926 = vpow.pop %v925
        %v927 = vadd.f32 %v926, 1.0
        %v928 = vrcp.pop %v927
        %v929 = vmul.f32 1.0, %v928
        %v930 = vtanh.pop %v916
        %v931 = vxor.u32 %v917, 2147483648
        %v932 = vmul.f32 %v931, 1.442695
        %v933 = vpow.pop %v932
        %v934 = vadd.f32 %v933, 1.0
        %v935 = vrcp.pop %v934
        %v936 = vmul.f32 1.0, %v935
        %v937 = vmul.f32 %v929, %v766
        %v938 = vmul.f32 %v923, %v930
        %v939 = vadd.f32 %v937, %v938
        %v940 = vtanh.pop %v939
        %v941 = vmul.f32 %v936, %v940
        %942 = vst [vmem:[#allocation3] sm:$0xff] %v939
        %943 = vst [vmem:[#allocation2] sm:$0xff] %v941
        %s944 = scalar_lea.vmem %s136, 24 [#allocation9]
        %945 = vst [vmem:[%s944] sm:$0xff] %v941
        %s946 = sand.u32 %s53, 1
        %s947 = scalar_lea.sflag [#allocation8], %s946
        %s948 = sand.u32 %s53, 1
        %s949 = smul.addr %s948, 32
        %s950 = scalar_lea.vmem [#allocation9], %s949
        // Predicated region
        $region37: #{tpu_custom_call.1} parent=23 // pred_check
          %p951 = pneg %p63
        $region38: #{tpu_custom_call.1} parent=23 // pred_check_branch
          %953 = sbr.rel (%p951) target = $region40
        $region39: #{tpu_custom_call.1} parent=23 // pred_region
          %s954 = smul.u32 4, %s19
          %s956 = ssub.s32 512, 512
          %957 = vsyncadd %s947, %s956
          %s958 = smul.addr %s954, 128
          %s959 = scalar_lea.hbm %s2, %s958
          %s960 = sshll.u32 %s950, 4
          %s961 = int_to_ptr.vmem [resolvable:$true] %s960
          %966 = dma.vmem_to_hbm [thread:$0]  %s961, 512, %s959, %s947, 128, 128, 8
        $region40: #{tpu_custom_call.1} parent=23 // pred_fallthru
          _
      $region24: #{tpu_custom_call.1} parent=5 // pred_fallthru
        _
      %p967 = scmp.le.s32.totalorder 2, %s14
      // Predicated region
      $region41: #{tpu_custom_call.1} parent=5 // pred_check
        %p968 = pneg %p967
      $region42: #{tpu_custom_call.1} parent=5 // pred_check_branch
        %970 = sbr.rel (%p968) target = $region44
      $region43: #{tpu_custom_call.1} parent=5 // pred_region
        %s971 = ssub.s32 %s14, 2
        // Predicated region
        $region45: #{tpu_custom_call.1} parent=43 // pred_check
          %p972 = pneg %p69
        $region46: #{tpu_custom_call.1} parent=43 // pred_check_branch
          %974 = sbr.rel (%p972) target = $region48
        $region47: #{tpu_custom_call.1} parent=43 // pred_region
          %s975 = sand.u32 %s54, 1
          %s976 = scalar_lea.sflag [#allocation8], %s975
          %s977 = sand.u32 %s54, 1
          %s978 = smul.addr %s977, 32
          %s979 = scalar_lea.vmem [#allocation9], %s978
          %980 = dma.done %s976, 512
        $region48: #{tpu_custom_call.1} parent=43 // pred_fallthru
          _
      $region44: #{tpu_custom_call.1} parent=5 // pred_fallthru
        _
    $region6: #{tpu_custom_call.1} parent=1 // loop_footer
      %s18 = sadd.s32 1, %s14
    $region7: #{tpu_custom_call.1} parent=1 // loop_footer_branch
      %13 = sbr.rel target = $region3
    $region8: #{tpu_custom_call.1} parent=1 // loop_exit
      _
    %981 = vsyncpa [#allocation7], 1
    %s982 = scalar_lea.sflag [#allocation7], 1
    %983 = vsyncpa %s982, 1
    %984 = vsyncpa [#allocation8], 1
    %s985 = scalar_lea.sflag [#allocation8], 1
    %986 = vsyncpa %s985, 1
  %987 = vsyncmov [#allocation5]
  %s988 = vpop.sfrf %987
  %p989 = scmp.eq.s32.totalorder %s988, 0
  %p990 = pneg %p989
  %992 = shalt.err (%p990)

</llo_original>
